<compile_context>
chip_gen: v5e
topology: v5e:2x2
jax: 0.10.0
libtpu: 0.0.40
codegen_flags: <defaults>
</compile_context>

<pallas_src>
import jax
import jax.numpy as jnp
from jax.experimental import pallas as pl
from jax.experimental.pallas import tpu as pltpu


def _transpose_scale_kernel(x_ref, o_ref):
    # x_ref: (tm, tn) VMEM tile, o_ref: (tn, tm) VMEM tile (batch dim squeezed).
    x = x_ref[...]
    o_ref[...] = (x.T * 3.0).astype(o_ref.dtype)


def _pick_tile(dim: int, target: int) -> int:
    """Largest 128-aligned divisor of `dim` that is <= target, else the full dim."""
    if dim <= target:
        return dim
    for t in range(target, 0, -128):
        if dim % t == 0:
            return t
    return dim  # no aligned divisor: fall back to full extent (still legal block)


def redundant_reshape_pattern1(x, *, tile_target: int = 512):
    """Computes 3.0 * swapaxes(x, -1, -2) (the module's forward) for x of shape (B, M, N)."""
    B, M, N = x.shape

    # Shape-based fallback: for tiny/unaligned planes the output last dim (< 128)
    # forces masked stores and per-grid-step overhead dominates -- XLA's fused
    # transpose wins there, so don't hand-roll a kernel.
    if M < 128 or N < 128:
        return (3.0 * jnp.swapaxes(x, -1, -2)).astype(x.dtype)

    tm = _pick_tile(M, tile_target)  # tile along M (becomes output last dim -> lane-dense)
    tn = _pick_tile(N, tile_target)  # tile along N
    grid = (B, pl.cdiv(M, tm), pl.cdiv(N, tn))

    itemsize = jnp.dtype(x.dtype).itemsize
    cost = pl.CostEstimate(
        flops=B * M * N,                       # one multiply per element
        transcendentals=0,
        bytes_accessed=2 * B * M * N * itemsize,  # read + write (pure streaming)
    )

    return pl.pallas_call(
        _transpose_scale_kernel,
        out_shape=jax.ShapeDtypeStruct((B, N, M), x.dtype),
        grid=grid,
        in_specs=[
            # Batch dim squeezed (None); kernel sees a 2-D (tm, tn) tile.
            pl.BlockSpec((None, tm, tn), lambda b, i, j: (b, i, j)),
        ],
        # Transposed tile goes to block (j, i) of the (B, N, M) output.
        out_specs=pl.BlockSpec((None, tn, tm), lambda b, i, j: (b, j, i)),
        compiler_params=pltpu.CompilerParams(
            dimension_semantics=("parallel", "parallel", "parallel"),
        ),
        cost_estimate=cost,
    )(x)


if __name__ == "__main__":
    key = jax.random.PRNGKey(0)

    # Tile-friendly shape that exercises the tiled Pallas path:
    # M=1024 -> tm=512, N=640 -> tn=128, grid = (2, 2, 5); output tile (128, 512)
    # is lane-dense.  Total data ~5 MiB -- small, runs instantly.
    B, M, N = 2, 1024, 640
    x = jax.random.normal(key, (B, M, N), dtype=jnp.float32)
    out = jax.block_until_ready(redundant_reshape_pattern1(x))
    ref = 3.0 * jnp.swapaxes(x, -1, -2)
    assert out.shape == (B, N, M), out.shape
    assert jnp.allclose(out, ref, atol=1e-6, rtol=1e-6), "mismatch vs reference (tiled path)"

    # The module's canonical tiny example input (2, 3, 4): goes through the
    # shape-based XLA fallback (a Pallas kernel would lose to fused XLA here).
    x_small = jax.random.normal(jax.random.PRNGKey(0), (2, 3, 4), dtype=jnp.float32)
    out_small = jax.block_until_ready(redundant_reshape_pattern1(x_small))
    ref_small = 3.0 * jnp.swapaxes(x_small, -1, -2)
    assert out_small.shape == (2, 4, 3), out_small.shape
    assert jnp.allclose(out_small, ref_small, atol=1e-6, rtol=1e-6), "mismatch (fallback path)"

    print("KERNEL_OK")
</pallas_src>

<mosaic_0001>
module attributes {stable_mosaic.version = 11 : i64} {
  func.func @_transpose_scale_kernel(%arg0: i32, %arg1: i32, %arg2: i32, %arg3: memref<1x512x128xf32, #tpu.memory_space<vmem>>, %arg4: memref<1x128x512xf32, #tpu.memory_space<vmem>>) attributes {dimension_semantics = [#tpu.dimension_semantics<parallel>, #tpu.dimension_semantics<parallel>, #tpu.dimension_semantics<parallel>], iteration_bounds = array<i64: 2, 2, 5>, scalar_prefetch = 0 : i64, scratch_operands = 0 : i64, tpu.core_type = #tpu.core_type<tc>, window_params = [{transform_indices = @transform_0, window_bounds = array<i64: 1, 512, 128>}, {transform_indices = @transform_1, window_bounds = array<i64: 1, 128, 512>}]} {
    %c0 = arith.constant 0 : index
    %c0_0 = arith.constant 0 : index
    %c0_1 = arith.constant 0 : index
    %0 = vector.load %arg3[%c0, %c0_0, %c0_1] : memref<1x512x128xf32, #tpu.memory_space<vmem>>, vector<1x512x128xf32>
    %1 = vector.shape_cast %0 : vector<1x512x128xf32> to vector<512x128xf32>
    %2 = tpu.transpose %1, [1, 0] : vector<512x128xf32> -> vector<128x512xf32>
    %cst = arith.constant 3.000000e+00 : f32
    %3 = vector.broadcast %cst : f32 to vector<128x512xf32>
    %4 = arith.mulf %2, %3 : vector<128x512xf32>
    %c0_2 = arith.constant 0 : index
    %c0_3 = arith.constant 0 : index
    %c0_4 = arith.constant 0 : index
    %5 = vector.load %arg4[%c0_2, %c0_3, %c0_4] : memref<1x128x512xf32, #tpu.memory_space<vmem>>, vector<1x128x512xf32>
    %6 = vector.shape_cast %5 : vector<1x128x512xf32> to vector<128x512xf32>
    %7 = vector.shape_cast %4 : vector<128x512xf32> to vector<1x128x512xf32>
    tpu.vector_store %arg4[%c0_2, %c0_3, %c0_4], %7 {strides = array<i32>} : memref<1x128x512xf32, #tpu.memory_space<vmem>>, vector<1x128x512xf32>,
    return
  }
  func.func @transform_0(%arg0: i32, %arg1: i32, %arg2: i32) -> (i32, i32, i32) {
    %c0_i32 = arith.constant 0 : i32
    return %arg0, %arg1, %arg2 : i32, i32, i32
  }
  func.func @transform_1(%arg0: i32, %arg1: i32, %arg2: i32) -> (i32, i32, i32) {
    %c0_i32 = arith.constant 0 : i32
    return %arg0, %arg2, %arg1 : i32, i32, i32
  }
}

</mosaic_0001>

<llo_original>
// kernel: tpu_custom_call.1
$region0: #{tpu_custom_call.1}
  #allocation0 [shape = 'u32[]', space=smem, size = 0x4, offset = 0x4, fixed_abs, tag = 'smem constant byte address 0x4 - core index']
  #allocation1 [shape = 'u32[72,128]{1,0:T(1,128)}', space=vmem, size = 0x9000, scoped, tag = 'internal scratch']
  %s0 = inlined_call_operand.hbm [shape: f32[2,1024,640], index: 0, kind: input, shape index: {}]
  %s1 = inlined_call_operand.hbm [shape: f32[2,640,1024], index: 1, kind: output, shape index: {}]
  %s2 = sld [smem:[#allocation0]]
  $region41: #{tpu_custom_call.1} parent=0
    _
  %s4 = ssub.s32 1, %s2
  %s5 = scalar_select 0, %s4, %s2
  $region1: #{tpu_custom_call.1} parent=0
    #allocation2 [shape = 'u8[524288]{0}', space=vmem, size = 0x80000, scoped, tag = 'input window, operand 0']
    #allocation3 [shape = 's32[2]{0}', space=sflag, size = 0x8, scoped, tag = 'scoped memory for tpu_custom_call.1']
    #allocation4 [shape = 's32[2]{0}', space=sflag, size = 0x8, scoped, tag = 'scoped memory for tpu_custom_call.1']
    #allocation5 [shape = 'u8[524288]{0}', space=vmem, size = 0x80000, scoped, tag = 'output window, operand 0']
    %6 = vsyncpa [#allocation3], 0
    %s7 = scalar_lea.sflag [#allocation3], 1
    %8 = vsyncpa %s7, 0
    %9 = vsyncpa [#allocation4], 0
    %s10 = scalar_lea.sflag [#allocation4], 1
    %11 = vsyncpa %s10, 0
    loop: start=0, step=1, limit=22
    $region2: #{tpu_custom_call.1} parent=1 // loop_pre_header
      _
    $region3: #{tpu_custom_call.1} parent=1 // loop_header
      %s13 = sphi 0, %s17
      %p14 = scmp.ge.s32.totalorder %s13, 22
      %s20 = sphi 0, %s39
      %s21 = sphi 0, %s35
      %s22 = sphi 0, %s31
      %s23 = sphi 0, %s20
      %s24 = sphi 0, %s21
      %s25 = sphi 0, %s22
      %s26 = sphi 0, %s23
      %s27 = sphi 0, %s24
      %s28 = sphi 0, %s25
      %s46 = sphi 0, %s48
      %s49 = sphi 0, %s46
      %s50 = sphi 0, %s49
      %s66 = sphi 0, %s50
      %s76 = sphi 0, %s78
      %s79 = sphi 0, %s76
      %s80 = sphi 0, %s79
      %s96 = sphi 0, %s80
    $region4: #{tpu_custom_call.1} parent=1 // loop_header_branch
      %16 = sbr.rel (%p14) target = $region8
    $region5: #{tpu_custom_call.1} parent=1 // loop_body
      %s18 = ssub.s32 %s13, 1
      %s19 = ssub.s32 %s13, 2
      %s29 = sadd.s32 1, %s22
      %p30 = scmp.ge.s32.totalorder %s29, 5
      %s31 = scalar_select %p30, 0, %s29
      %s32 = sadd.s32 1, %s21
      %s33 = scalar_select %p30, %s32, %s21
      %p34 = scmp.ge.s32.totalorder %s33, 2
      %s35 = scalar_select %p34, 0, %s33
      %s36 = sadd.s32 1, %s20
      %s37 = scalar_select %p34, %s36, %s20
      %p38 = scmp.ge.s32.totalorder %s37, 2
      %s39 = scalar_select %p38, 0, %s37
      %s40 = ssub.s32 %s20, %s39
      %s41 = ssub.s32 %s21, %s35
      %s42 = sor.u32 %s40, %s41
      %s43 = ssub.s32 %s22, %s31
      %s44 = sor.u32 %s42, %s43
      %p45 = scmp.eq.s32.totalorder %s44, 0
      %s47 = sadd.s32 %s46, 1
      %s48 = scalar_select %p45, %s46, %s47
      %p51 = pneg %p45
      %p52 = scmp.eq.s32.totalorder %s13, 19
      %p53 = por %p51, %p52
      %p54 = scmp.ne.s32.totalorder %s46, %s49
      %p55 = scmp.eq.s32.totalorder %s13, 0
      %p56 = por %p54, %p55
      %p57 = scmp.ne.s32.totalorder %s46, %s49
      %p58 = scmp.eq.s32.totalorder %s18, 19
      %p59 = por %p57, %p58
      %p60 = scmp.ne.s32.totalorder %s49, %s50
      %p61 = scmp.eq.s32.totalorder %s18, 0
      %p62 = por %p60, %p61
      %p63 = scmp.ne.s32.totalorder %s49, %s50
      %p64 = scmp.eq.s32.totalorder %s19, 19
      %p65 = por %p63, %p64
      %p67 = scmp.ne.s32.totalorder %s50, %s66
      %p68 = scmp.eq.s32.totalorder %s19, 0
      %p69 = por %p67, %p68
      %s70 = ssub.s32 %s20, %s39
      %s71 = ssub.s32 %s22, %s31
      %s72 = sor.u32 %s70, %s71
      %s73 = ssub.s32 %s21, %s35
      %s74 = sor.u32 %s72, %s73
      %p75 = scmp.eq.s32.totalorder %s74, 0
      %s77 = sadd.s32 %s76, 1
      %s78 = scalar_select %p75, %s76, %s77
      %p81 = pneg %p75
      %p82 = scmp.eq.s32.totalorder %s13, 19
      %p83 = por %p81, %p82
      %p84 = scmp.ne.s32.totalorder %s76, %s79
      %p85 = scmp.eq.s32.totalorder %s13, 0
      %p86 = por %p84, %p85
      %p87 = scmp.ne.s32.totalorder %s76, %s79
      %p88 = scmp.eq.s32.totalorder %s18, 19
      %p89 = por %p87, %p88
      %p90 = scmp.ne.s32.totalorder %s79, %s80
      %p91 = scmp.eq.s32.totalorder %s18, 0
      %p92 = por %p90, %p91
      %p93 = scmp.ne.s32.totalorder %s79, %s80
      %p94 = scmp.eq.s32.totalorder %s19, 19
      %p95 = por %p93, %p94
      %p97 = scmp.ne.s32.totalorder %s80, %s96
      %p98 = scmp.eq.s32.totalorder %s19, 0
      %p99 = por %p97, %p98
      %p100 = scmp.le.s32.totalorder 1, %s13
      %p101 = scmp.lt.s32.totalorder %s13, 21
      %p102 = pnand %p100, %p101
      %p103 = pneg %p102
      // Predicated region
      $region9: #{tpu_custom_call.1} parent=5 // pred_check
        _
      $region10: #{tpu_custom_call.1} parent=5 // pred_check_branch
        %105 = sbr.rel (%p102) target = $region12
      $region11: #{tpu_custom_call.1} parent=5 // pred_region
        %s106 = ssub.s32 %s13, 1
      $region12: #{tpu_custom_call.1} parent=5 // pred_fallthru
        _
      %p107 = scmp.lt.s32.totalorder %s13, 20
      // Predicated region
      $region13: #{tpu_custom_call.1} parent=5 // pred_check
        %p108 = pneg %p107
      $region14: #{tpu_custom_call.1} parent=5 // pred_check_branch
        %110 = sbr.rel (%p108) target = $region16
      $region15: #{tpu_custom_call.1} parent=5 // pred_region
        // Predicated region
        $region17: #{tpu_custom_call.1} parent=15 // pred_check
          %p111 = pneg %p56
        $region18: #{tpu_custom_call.1} parent=15 // pred_check_branch
          %113 = sbr.rel (%p111) target = $region20
        $region19: #{tpu_custom_call.1} parent=15 // pred_region
          %s114 = sand.u32 %s46, 1
          %s115 = scalar_lea.sflag [#allocation3], %s114
          %s116 = sand.u32 %s46, 1
          %s117 = smul.addr %s116, 512
          %s118 = scalar_lea.vmem [#allocation2], %s117
          %s119 = smul.u32 64, %s21
          %121 = vsyncadd %s115, 0
          %s122 = smul.addr %s119, 5
          %s123 = sadd.s32 %s22, %s122
          %s124 = smul.addr %s20, 640
          %s125 = sadd.s32 %s123, %s124
          %s126 = smul.addr %s125, 8
          %s127 = scalar_lea.hbm %s0, %s126
          %s128 = sshll.u32 %s127, 4
          %s129 = int_to_ptr.hbm [resolvable:$true] %s128
          %s130 = sshll.u32 %s118, 4
          %s131 = int_to_ptr.vmem [resolvable:$true] %s130
          %136 = dma.hbm_to_vmem [thread:$0]  %s129, 8192, %s131, %s115, 640, 128, 8
        $region20: #{tpu_custom_call.1} parent=15 // pred_fallthru
          _
      $region16: #{tpu_custom_call.1} parent=5 // pred_fallthru
        _
      %p137 = scmp.le.s32.totalorder 1, %s13
      %p138 = scmp.lt.s32.totalorder %s13, 21
      %p139 = pnand %p137, %p138
      %p140 = pneg %p139
      // Predicated region
      $region21: #{tpu_custom_call.1} parent=5 // pred_check
        _
      $region22: #{tpu_custom_call.1} parent=5 // pred_check_branch
        %142 = sbr.rel (%p139) target = $region24
      $region23: #{tpu_custom_call.1} parent=5 // pred_region
        %s143 = ssub.s32 %s13, 1
        %s144 = sand.u32 %s49, 1
        %s145 = scalar_lea.sflag [#allocation3], %s144
        %s146 = sand.u32 %s49, 1
        %s147 = smul.addr %s146, 512
        %s148 = scalar_lea.vmem [#allocation2], %s147
        // Predicated region
        $region25: #{tpu_custom_call.1} parent=23 // pred_check
          %p149 = pneg %p62
        $region26: #{tpu_custom_call.1} parent=23 // pred_check_branch
          %151 = sbr.rel (%p149) target = $region28
        $region27: #{tpu_custom_call.1} parent=23 // pred_region
          %153 = dma.done %s145, 8192
        $region28: #{tpu_custom_call.1} parent=23 // pred_fallthru
          _
        %s154 = sand.u32 %s49, 1
        %s155 = scalar_lea.sflag [#allocation3], %s154
        %s156 = sand.u32 %s49, 1
        %s157 = smul.addr %s156, 512
        %s158 = scalar_lea.vmem [#allocation2], %s157
        %p159 = pneg %p62
        %p160 = pneg %p59
        %p161 = pneg %p92
        %p162 = pneg %p89
        %s163 = sand.u32 %s79, 1
        %s164 = scalar_lea.sflag [#allocation4], %s163
        %s165 = sand.u32 %s79, 1
        %s166 = smul.addr %s165, 512
        %s167 = scalar_lea.vmem [#allocation5], %s166
        %s168 = smul.u32 64, %s24
        %s169 = smul.u32 16, %s25
        %s170 = smul.u32 4, %s24
        %v171 = vld [vmem:[%s148] sm:$0xff]
        %v172 = vld [vmem:[%s148 + $0x8] sm:$0xff]
        %v173 = vld [vmem:[%s148 + $0x10] sm:$0xff]
        %v174 = vld [vmem:[%s148 + $0x18] sm:$0xff]
        %v175 = vld [vmem:[%s148 + $0x20] sm:$0xff]
        %v176 = vld [vmem:[%s148 + $0x28] sm:$0xff]
        %v177 = vld [vmem:[%s148 + $0x30] sm:$0xff]
        %v178 = vld [vmem:[%s148 + $0x38] sm:$0xff]
        %v179 = vld [vmem:[%s148 + $0x40] sm:$0xff]
        %v180 = vld [vmem:[%s148 + $0x48] sm:$0xff]
        %v181 = vld [vmem:[%s148 + $0x50] sm:$0xff]
        %v182 = vld [vmem:[%s148 + $0x58] sm:$0xff]
        %v183 = vld [vmem:[%s148 + $0x60] sm:$0xff]
        %v184 = vld [vmem:[%s148 + $0x68] sm:$0xff]
        %v185 = vld [vmem:[%s148 + $0x70] sm:$0xff]
        %v186 = vld [vmem:[%s148 + $0x78] sm:$0xff]
        %v187 = vld [vmem:[%s148 + $0x80] sm:$0xff]
        %v188 = vld [vmem:[%s148 + $0x88] sm:$0xff]
        %v189 = vld [vmem:[%s148 + $0x90] sm:$0xff]
        %v190 = vld [vmem:[%s148 + $0x98] sm:$0xff]
        %v191 = vld [vmem:[%s148 + $0xa0] sm:$0xff]
        %v192 = vld [vmem:[%s148 + $0xa8] sm:$0xff]
        %v193 = vld [vmem:[%s148 + $0xb0] sm:$0xff]
        %v194 = vld [vmem:[%s148 + $0xb8] sm:$0xff]
        %v195 = vld [vmem:[%s148 + $0xc0] sm:$0xff]
        %v196 = vld [vmem:[%s148 + $0xc8] sm:$0xff]
        %v197 = vld [vmem:[%s148 + $0xd0] sm:$0xff]
        %v198 = vld [vmem:[%s148 + $0xd8] sm:$0xff]
        %v199 = vld [vmem:[%s148 + $0xe0] sm:$0xff]
        %v200 = vld [vmem:[%s148 + $0xe8] sm:$0xff]
        %v201 = vld [vmem:[%s148 + $0xf0] sm:$0xff]
        %v202 = vld [vmem:[%s148 + $0xf8] sm:$0xff]
        %v203 = vld [vmem:[%s148 + $0x100] sm:$0xff]
        %v204 = vld [vmem:[%s148 + $0x108] sm:$0xff]
        %v205 = vld [vmem:[%s148 + $0x110] sm:$0xff]
        %v206 = vld [vmem:[%s148 + $0x118] sm:$0xff]
        %v207 = vld [vmem:[%s148 + $0x120] sm:$0xff]
        %v208 = vld [vmem:[%s148 + $0x128] sm:$0xff]
        %v209 = vld [vmem:[%s148 + $0x130] sm:$0xff]
        %v210 = vld [vmem:[%s148 + $0x138] sm:$0xff]
        %v211 = vld [vmem:[%s148 + $0x140] sm:$0xff]
        %v212 = vld [vmem:[%s148 + $0x148] sm:$0xff]
        %v213 = vld [vmem:[%s148 + $0x150] sm:$0xff]
        %v214 = vld [vmem:[%s148 + $0x158] sm:$0xff]
        %v215 = vld [vmem:[%s148 + $0x160] sm:$0xff]
        %v216 = vld [vmem:[%s148 + $0x168] sm:$0xff]
        %v217 = vld [vmem:[%s148 + $0x170] sm:$0xff]
        %v218 = vld [vmem:[%s148 + $0x178] sm:$0xff]
        %v219 = vld [vmem:[%s148 + $0x180] sm:$0xff]
        %v220 = vld [vmem:[%s148 + $0x188] sm:$0xff]
        %v221 = vld [vmem:[%s148 + $0x190] sm:$0xff]
        %v222 = vld [vmem:[%s148 + $0x198] sm:$0xff]
        %v223 = vld [vmem:[%s148 + $0x1a0] sm:$0xff]
        %v224 = vld [vmem:[%s148 + $0x1a8] sm:$0xff]
        %v225 = vld [vmem:[%s148 + $0x1b0] sm:$0xff]
        %v226 = vld [vmem:[%s148 + $0x1b8] sm:$0xff]
        %v227 = vld [vmem:[%s148 + $0x1c0] sm:$0xff]
        %v228 = vld [vmem:[%s148 + $0x1c8] sm:$0xff]
        %v229 = vld [vmem:[%s148 + $0x1d0] sm:$0xff]
        %v230 = vld [vmem:[%s148 + $0x1d8] sm:$0xff]
        %v231 = vld [vmem:[%s148 + $0x1e0] sm:$0xff]
        %v232 = vld [vmem:[%s148 + $0x1e8] sm:$0xff]
        %v233 = vld [vmem:[%s148 + $0x1f0] sm:$0xff]
        %v234 = vld [vmem:[%s148 + $0x1f8] sm:$0xff]
        %235 = vxpose.xlu0.b32.start [1/16] %v171, 128
        %236 = vxpose.xlu0.b32.cont [2/16] %v172, 128
        %237 = vxpose.xlu0.b32.cont [3/16] %v173, 128
        %238 = vxpose.xlu0.b32.cont [4/16] %v174, 128
        %239 = vxpose.xlu0.b32.cont [5/16] %v175, 128
        %240 = vxpose.xlu0.b32.cont [6/16] %v176, 128
        %241 = vxpose.xlu0.b32.cont [7/16] %v177, 128
        %242 = vxpose.xlu0.b32.cont [8/16] %v178, 128
        %243 = vxpose.xlu0.b32.cont [9/16] %v179, 128
        %244 = vxpose.xlu0.b32.cont [10/16] %v180, 128
        %245 = vxpose.xlu0.b32.cont [11/16] %v181, 128
        %246 = vxpose.xlu0.b32.cont [12/16] %v182, 128
        %247 = vxpose.xlu0.b32.cont [13/16] %v183, 128
        %248 = vxpose.xlu0.b32.cont [14/16] %v184, 128
        %249 = vxpose.xlu0.b32.cont [15/16] %v185, 128
        %250 = vxpose.xlu0.b32.end [16/16] %v186, 128
        %v251 = vpop.trf.xlu0
        %v252 = vpop.trf.xlu0
        %v253 = vpop.trf.xlu0
        %v254 = vpop.trf.xlu0
        %v255 = vpop.trf.xlu0
        %v256 = vpop.trf.xlu0
        %v257 = vpop.trf.xlu0
        %v258 = vpop.trf.xlu0
        %v259 = vpop.trf.xlu0
        %v260 = vpop.trf.xlu0
        %v261 = vpop.trf.xlu0
        %v262 = vpop.trf.xlu0
        %v263 = vpop.trf.xlu0
        %v264 = vpop.trf.xlu0
        %v265 = vpop.trf.xlu0
        %v266 = vpop.trf.xlu0
        %267 = vxpose.xlu0.b32.start [1/16] %v187, 128
        %268 = vxpose.xlu0.b32.cont [2/16] %v188, 128
        %269 = vxpose.xlu0.b32.cont [3/16] %v189, 128
        %270 = vxpose.xlu0.b32.cont [4/16] %v190, 128
        %271 = vxpose.xlu0.b32.cont [5/16] %v191, 128
        %272 = vxpose.xlu0.b32.cont [6/16] %v192, 128
        %273 = vxpose.xlu0.b32.cont [7/16] %v193, 128
        %274 = vxpose.xlu0.b32.cont [8/16] %v194, 128
        %275 = vxpose.xlu0.b32.cont [9/16] %v195, 128
        %276 = vxpose.xlu0.b32.cont [10/16] %v196, 128
        %277 = vxpose.xlu0.b32.cont [11/16] %v197, 128
        %278 = vxpose.xlu0.b32.cont [12/16] %v198, 128
        %279 = vxpose.xlu0.b32.cont [13/16] %v199, 128
        %280 = vxpose.xlu0.b32.cont [14/16] %v200, 128
        %281 = vxpose.xlu0.b32.cont [15/16] %v201, 128
        %282 = vxpose.xlu0.b32.end [16/16] %v202, 128
        %v283 = vpop.trf.xlu0
        %v284 = vpop.trf.xlu0
        %v285 = vpop.trf.xlu0
        %v286 = vpop.trf.xlu0
        %v287 = vpop.trf.xlu0
        %v288 = vpop.trf.xlu0
        %v289 = vpop.trf.xlu0
        %v290 = vpop.trf.xlu0
        %v291 = vpop.trf.xlu0
        %v292 = vpop.trf.xlu0
        %v293 = vpop.trf.xlu0
        %v294 = vpop.trf.xlu0
        %v295 = vpop.trf.xlu0
        %v296 = vpop.trf.xlu0
        %v297 = vpop.trf.xlu0
        %v298 = vpop.trf.xlu0
        %299 = vxpose.xlu0.b32.start [1/16] %v203, 128
        %300 = vxpose.xlu0.b32.cont [2/16] %v204, 128
        %301 = vxpose.xlu0.b32.cont [3/16] %v205, 128
        %302 = vxpose.xlu0.b32.cont [4/16] %v206, 128
        %303 = vxpose.xlu0.b32.cont [5/16] %v207, 128
        %304 = vxpose.xlu0.b32.cont [6/16] %v208, 128
        %305 = vxpose.xlu0.b32.cont [7/16] %v209, 128
        %306 = vxpose.xlu0.b32.cont [8/16] %v210, 128
        %307 = vxpose.xlu0.b32.cont [9/16] %v211, 128
        %308 = vxpose.xlu0.b32.cont [10/16] %v212, 128
        %309 = vxpose.xlu0.b32.cont [11/16] %v213, 128
        %310 = vxpose.xlu0.b32.cont [12/16] %v214, 128
        %311 = vxpose.xlu0.b32.cont [13/16] %v215, 128
        %312 = vxpose.xlu0.b32.cont [14/16] %v216, 128
        %313 = vxpose.xlu0.b32.cont [15/16] %v217, 128
        %314 = vxpose.xlu0.b32.end [16/16] %v218, 128
        %v315 = vpop.trf.xlu0
        %v316 = vpop.trf.xlu0
        %v317 = vpop.trf.xlu0
        %v318 = vpop.trf.xlu0
        %v319 = vpop.trf.xlu0
        %v320 = vpop.trf.xlu0
        %v321 = vpop.trf.xlu0
        %v322 = vpop.trf.xlu0
        %v323 = vpop.trf.xlu0
        %v324 = vpop.trf.xlu0
        %v325 = vpop.trf.xlu0
        %v326 = vpop.trf.xlu0
        %v327 = vpop.trf.xlu0
        %v328 = vpop.trf.xlu0
        %v329 = vpop.trf.xlu0
        %v330 = vpop.trf.xlu0
        %331 = vxpose.xlu0.b32.start [1/16] %v219, 128
        %332 = vxpose.xlu0.b32.cont [2/16] %v220, 128
        %333 = vxpose.xlu0.b32.cont [3/16] %v221, 128
        %334 = vxpose.xlu0.b32.cont [4/16] %v222, 128
        %335 = vxpose.xlu0.b32.cont [5/16] %v223, 128
        %336 = vxpose.xlu0.b32.cont [6/16] %v224, 128
        %337 = vxpose.xlu0.b32.cont [7/16] %v225, 128
        %338 = vxpose.xlu0.b32.cont [8/16] %v226, 128
        %339 = vxpose.xlu0.b32.cont [9/16] %v227, 128
        %340 = vxpose.xlu0.b32.cont [10/16] %v228, 128
        %341 = vxpose.xlu0.b32.cont [11/16] %v229, 128
        %342 = vxpose.xlu0.b32.cont [12/16] %v230, 128
        %343 = vxpose.xlu0.b32.cont [13/16] %v231, 128
        %344 = vxpose.xlu0.b32.cont [14/16] %v232, 128
        %345 = vxpose.xlu0.b32.cont [15/16] %v233, 128
        %346 = vxpose.xlu0.b32.end [16/16] %v234, 128
        %v347 = vpop.trf.xlu0
        %v348 = vpop.trf.xlu0
        %v349 = vpop.trf.xlu0
        %v350 = vpop.trf.xlu0
        %v351 = vpop.trf.xlu0
        %v352 = vpop.trf.xlu0
        %v353 = vpop.trf.xlu0
        %v354 = vpop.trf.xlu0
        %v355 = vpop.trf.xlu0
        %v356 = vpop.trf.xlu0
        %v357 = vpop.trf.xlu0
        %v358 = vpop.trf.xlu0
        %v359 = vpop.trf.xlu0
        %v360 = vpop.trf.xlu0
        %v361 = vpop.trf.xlu0
        %v362 = vpop.trf.xlu0
        %v363 = vmul.f32 %v251, 3.0
        %v364 = vmul.f32 %v283, 3.0
        %v365 = vmul.f32 %v315, 3.0
        %v366 = vmul.f32 %v347, 3.0
        %v367 = vmul.f32 %v252, 3.0
        %v368 = vmul.f32 %v284, 3.0
        %v369 = vmul.f32 %v316, 3.0
        %v370 = vmul.f32 %v348, 3.0
        %v371 = vmul.f32 %v253, 3.0
        %v372 = vmul.f32 %v285, 3.0
        %v373 = vmul.f32 %v317, 3.0
        %v374 = vmul.f32 %v349, 3.0
        %v375 = vmul.f32 %v254, 3.0
        %v376 = vmul.f32 %v286, 3.0
        %v377 = vmul.f32 %v318, 3.0
        %v378 = vmul.f32 %v350, 3.0
        %v379 = vmul.f32 %v255, 3.0
        %v380 = vmul.f32 %v287, 3.0
        %v381 = vmul.f32 %v319, 3.0
        %v382 = vmul.f32 %v351, 3.0
        %v383 = vmul.f32 %v256, 3.0
        %v384 = vmul.f32 %v288, 3.0
        %v385 = vmul.f32 %v320, 3.0
        %v386 = vmul.f32 %v352, 3.0
        %v387 = vmul.f32 %v257, 3.0
        %v388 = vmul.f32 %v289, 3.0
        %v389 = vmul.f32 %v321, 3.0
        %v390 = vmul.f32 %v353, 3.0
        %v391 = vmul.f32 %v258, 3.0
        %v392 = vmul.f32 %v290, 3.0
        %v393 = vmul.f32 %v322, 3.0
        %v394 = vmul.f32 %v354, 3.0
        %v395 = vmul.f32 %v259, 3.0
        %v396 = vmul.f32 %v291, 3.0
        %v397 = vmul.f32 %v323, 3.0
        %v398 = vmul.f32 %v355, 3.0
        %v399 = vmul.f32 %v260, 3.0
        %v400 = vmul.f32 %v292, 3.0
        %v401 = vmul.f32 %v324, 3.0
        %v402 = vmul.f32 %v356, 3.0
        %v403 = vmul.f32 %v261, 3.0
        %v404 = vmul.f32 %v293, 3.0
        %v405 = vmul.f32 %v325, 3.0
        %v406 = vmul.f32 %v357, 3.0
        %v407 = vmul.f32 %v262, 3.0
        %v408 = vmul.f32 %v294, 3.0
        %v409 = vmul.f32 %v326, 3.0
        %v410 = vmul.f32 %v358, 3.0
        %v411 = vmul.f32 %v263, 3.0
        %v412 = vmul.f32 %v295, 3.0
        %v413 = vmul.f32 %v327, 3.0
        %v414 = vmul.f32 %v359, 3.0
        %v415 = vmul.f32 %v264, 3.0
        %v416 = vmul.f32 %v296, 3.0
        %v417 = vmul.f32 %v328, 3.0
        %v418 = vmul.f32 %v360, 3.0
        %v419 = vmul.f32 %v265, 3.0
        %v420 = vmul.f32 %v297, 3.0
        %v421 = vmul.f32 %v329, 3.0
        %v422 = vmul.f32 %v361, 3.0
        %v423 = vmul.f32 %v266, 3.0
        %v424 = vmul.f32 %v298, 3.0
        %v425 = vmul.f32 %v330, 3.0
        %v426 = vmul.f32 %v362, 3.0
        %427 = vst [vmem:[%s167] sm:$0xff] %v363
        %428 = vst [vmem:[%s167 + $0x8] sm:$0xff] %v364
        %429 = vst [vmem:[%s167 + $0x10] sm:$0xff] %v365
        %430 = vst [vmem:[%s167 + $0x18] sm:$0xff] %v366
        %431 = vst [vmem:[%s167 + $0x20] sm:$0xff] %v367
        %432 = vst [vmem:[%s167 + $0x28] sm:$0xff] %v368
        %433 = vst [vmem:[%s167 + $0x30] sm:$0xff] %v369
        %434 = vst [vmem:[%s167 + $0x38] sm:$0xff] %v370
        %435 = vst [vmem:[%s167 + $0x40] sm:$0xff] %v371
        %436 = vst [vmem:[%s167 + $0x48] sm:$0xff] %v372
        %437 = vst [vmem:[%s167 + $0x50] sm:$0xff] %v373
        %438 = vst [vmem:[%s167 + $0x58] sm:$0xff] %v374
        %439 = vst [vmem:[%s167 + $0x60] sm:$0xff] %v375
        %440 = vst [vmem:[%s167 + $0x68] sm:$0xff] %v376
        %441 = vst [vmem:[%s167 + $0x70] sm:$0xff] %v377
        %442 = vst [vmem:[%s167 + $0x78] sm:$0xff] %v378
        %443 = vst [vmem:[%s167 + $0x80] sm:$0xff] %v379
        %444 = vst [vmem:[%s167 + $0x88] sm:$0xff] %v380
        %445 = vst [vmem:[%s167 + $0x90] sm:$0xff] %v381
        %446 = vst [vmem:[%s167 + $0x98] sm:$0xff] %v382
        %447 = vst [vmem:[%s167 + $0xa0] sm:$0xff] %v383
        %448 = vst [vmem:[%s167 + $0xa8] sm:$0xff] %v384
        %449 = vst [vmem:[%s167 + $0xb0] sm:$0xff] %v385
        %450 = vst [vmem:[%s167 + $0xb8] sm:$0xff] %v386
        %451 = vst [vmem:[%s167 + $0xc0] sm:$0xff] %v387
        %452 = vst [vmem:[%s167 + $0xc8] sm:$0xff] %v388
        %453 = vst [vmem:[%s167 + $0xd0] sm:$0xff] %v389
        %454 = vst [vmem:[%s167 + $0xd8] sm:$0xff] %v390
        %455 = vst [vmem:[%s167 + $0xe0] sm:$0xff] %v391
        %456 = vst [vmem:[%s167 + $0xe8] sm:$0xff] %v392
        %457 = vst [vmem:[%s167 + $0xf0] sm:$0xff] %v393
        %458 = vst [vmem:[%s167 + $0xf8] sm:$0xff] %v394
        %459 = vst [vmem:[%s167 + $0x100] sm:$0xff] %v395
        %460 = vst [vmem:[%s167 + $0x108] sm:$0xff] %v396
        %461 = vst [vmem:[%s167 + $0x110] sm:$0xff] %v397
        %462 = vst [vmem:[%s167 + $0x118] sm:$0xff] %v398
        %463 = vst [vmem:[%s167 + $0x120] sm:$0xff] %v399
        %464 = vst [vmem:[%s167 + $0x128] sm:$0xff] %v400
        %465 = vst [vmem:[%s167 + $0x130] sm:$0xff] %v401
        %466 = vst [vmem:[%s167 + $0x138] sm:$0xff] %v402
        %467 = vst [vmem:[%s167 + $0x140] sm:$0xff] %v403
        %468 = vst [vmem:[%s167 + $0x148] sm:$0xff] %v404
        %469 = vst [vmem:[%s167 + $0x150] sm:$0xff] %v405
        %470 = vst [vmem:[%s167 + $0x158] sm:$0xff] %v406
        %471 = vst [vmem:[%s167 + $0x160] sm:$0xff] %v407
        %472 = vst [vmem:[%s167 + $0x168] sm:$0xff] %v408
        %473 = vst [vmem:[%s167 + $0x170] sm:$0xff] %v409
        %474 = vst [vmem:[%s167 + $0x178] sm:$0xff] %v410
        %475 = vst [vmem:[%s167 + $0x180] sm:$0xff] %v411
        %476 = vst [vmem:[%s167 + $0x188] sm:$0xff] %v412
        %477 = vst [vmem:[%s167 + $0x190] sm:$0xff] %v413
        %478 = vst [vmem:[%s167 + $0x198] sm:$0xff] %v414
        %479 = vst [vmem:[%s167 + $0x1a0] sm:$0xff] %v415
        %480 = vst [vmem:[%s167 + $0x1a8] sm:$0xff] %v416
        %481 = vst [vmem:[%s167 + $0x1b0] sm:$0xff] %v417
        %482 = vst [vmem:[%s167 + $0x1b8] sm:$0xff] %v418
        %483 = vst [vmem:[%s167 + $0x1c0] sm:$0xff] %v419
        %484 = vst [vmem:[%s167 + $0x1c8] sm:$0xff] %v420
        %485 = vst [vmem:[%s167 + $0x1d0] sm:$0xff] %v421
        %486 = vst [vmem:[%s167 + $0x1d8] sm:$0xff] %v422
        %487 = vst [vmem:[%s167 + $0x1e0] sm:$0xff] %v423
        %488 = vst [vmem:[%s167 + $0x1e8] sm:$0xff] %v424
        %489 = vst [vmem:[%s167 + $0x1f0] sm:$0xff] %v425
        %490 = vst [vmem:[%s167 + $0x1f8] sm:$0xff] %v426
        %s491 = sand.u32 %s79, 1
        %s492 = scalar_lea.sflag [#allocation4], %s491
        %s493 = sand.u32 %s79, 1
        %s494 = smul.addr %s493, 512
        %s495 = scalar_lea.vmem [#allocation5], %s494
        // Predicated region
        $region29: #{tpu_custom_call.1} parent=23 // pred_check
          %p496 = pneg %p89
        $region30: #{tpu_custom_call.1} parent=23 // pred_check_branch
          %498 = sbr.rel (%p496) target = $region32
        $region31: #{tpu_custom_call.1} parent=23 // pred_region
          %s499 = smul.u32 16, %s25
          %s500 = smul.u32 4, %s24
          %502 = vsyncadd %s492, 0
          %s503 = smul.addr %s499, 8
          %s504 = sadd.s32 %s500, %s503
          %s505 = smul.addr %s23, 640
          %s506 = sadd.s32 %s504, %s505
          %s507 = smul.addr %s506, 8
          %s508 = scalar_lea.hbm %s1, %s507
          %s509 = sshll.u32 %s495, 4
          %s510 = int_to_ptr.vmem [resolvable:$true] %s509
          %s511 = sshll.u32 %s508, 4
          %s512 = int_to_ptr.hbm [resolvable:$true] %s511
          %517 = dma.vmem_to_hbm [thread:$0]  %s510, 8192, %s512, %s492, 512, 1024, 32
        $region32: #{tpu_custom_call.1} parent=23 // pred_fallthru
          _
      $region24: #{tpu_custom_call.1} parent=5 // pred_fallthru
        _
      %p518 = scmp.le.s32.totalorder 2, %s13
      // Predicated region
      $region33: #{tpu_custom_call.1} parent=5 // pred_check
        %p519 = pneg %p518
      $region34: #{tpu_custom_call.1} parent=5 // pred_check_branch
        %521 = sbr.rel (%p519) target = $region36
      $region35: #{tpu_custom_call.1} parent=5 // pred_region
        %s522 = ssub.s32 %s13, 2
        // Predicated region
        $region37: #{tpu_custom_call.1} parent=35 // pred_check
          %p523 = pneg %p95
        $region38: #{tpu_custom_call.1} parent=35 // pred_check_branch
          %525 = sbr.rel (%p523) target = $region40
        $region39: #{tpu_custom_call.1} parent=35 // pred_region
          %s526 = sand.u32 %s80, 1
          %s527 = scalar_lea.sflag [#allocation4], %s526
          %s528 = sand.u32 %s80, 1
          %s529 = smul.addr %s528, 512
          %s530 = scalar_lea.vmem [#allocation5], %s529
          %532 = dma.done %s527, 8192
        $region40: #{tpu_custom_call.1} parent=35 // pred_fallthru
          _
      $region36: #{tpu_custom_call.1} parent=5 // pred_fallthru
        _
    $region6: #{tpu_custom_call.1} parent=1 // loop_footer
      %s17 = sadd.s32 1, %s13
    $region7: #{tpu_custom_call.1} parent=1 // loop_footer_branch
      %12 = sbr.rel target = $region3
    $region8: #{tpu_custom_call.1} parent=1 // loop_exit
      _
    %533 = vsyncpa [#allocation3], 1
    %s534 = scalar_lea.sflag [#allocation3], 1
    %535 = vsyncpa %s534, 1
    %536 = vsyncpa [#allocation4], 1
    %s537 = scalar_lea.sflag [#allocation4], 1
    %538 = vsyncpa %s537, 1

</llo_original>
